<compile_context>
chip_gen: v6e
topology: v6e:2x2x1
jax: 0.10.0
libtpu: 0.0.40
codegen_flags: <defaults>
</compile_context>

<pallas_src>
import jax
import jax.numpy as jnp
from jax.experimental import pallas as pl
from jax.experimental.pallas import tpu as pltpu


# ----------------------------------------------------------------------------
# Fused whole-network kernel: four matmuls + bias + ReLU, all operands in VMEM.
# bf16 MXU operands, f32 accumulation, f32 epilogues.
# ----------------------------------------------------------------------------
def _encoder_kernel(x_ref, m1_ref, b1_ref, m2_ref, b2_ref,
                    w3_ref, b3_ref, w4_ref, b4_ref, o_ref):
    # conv1 as Toeplitz matmul + bias + ReLU:   (tm, Cin*L) -> (tm, C1*L1)
    h = jnp.dot(x_ref[...], m1_ref[...], preferred_element_type=jnp.float32)
    h = jnp.maximum(h + b1_ref[...], 0.0)
    # conv2 (stride 2) as Toeplitz matmul + bias + ReLU: (tm, C1*L1) -> (tm, C2*L2)
    h = jnp.dot(h.astype(jnp.bfloat16), m2_ref[...],
                preferred_element_type=jnp.float32)
    h = jnp.maximum(h + b2_ref[...], 0.0)
    # Column order of h is c*L2 + l == torch's NCL .view(N, -1) flatten,
    # so no reshape/transpose is needed before the linear layers.
    h = jnp.dot(h.astype(jnp.bfloat16), w3_ref[...],
                preferred_element_type=jnp.float32)
    h = jnp.maximum(h + b3_ref[...], 0.0)
    h = jnp.dot(h.astype(jnp.bfloat16), w4_ref[...],
                preferred_element_type=jnp.float32) + b4_ref[...]
    o_ref[...] = h.astype(o_ref.dtype)


def simple_encoder_forward(x, packed):
    """x: (N, C_in, L) NCL, packed: init-time-prepared weights.  Returns (N, F_out)."""
    n = x.shape[0]
    out_dtype = x.dtype
    # Flatten in the wrapper (contiguous row-major view; free).  Cast to bf16
    # here so the kernel DMAs half the bytes for the activation input.
    x2d = x.reshape(n, -1).astype(jnp.bfloat16)

    weights = (packed["m1"], packed["b1"], packed["m2"], packed["b2"],
               packed["w3"], packed["b3"], packed["w4"], packed["b4"])
    args = (x2d,) + weights
    k_in = x2d.shape[1]
    out_features = packed["w4"].shape[1]

    # Batch-row tiling: effectively gridless at tiny N (block == full array),
    # tm=256 rows per step at scale so both v7x TensorCores get work.
    tm = n if n <= 256 else 256
    grid = (pl.cdiv(n, tm),)

    in_specs = [pl.BlockSpec((tm, k_in), lambda i: (i, 0))]
    # Weights / biases: constant index map -> VMEM-resident, never re-DMA'd.
    for w in weights:
        in_specs.append(pl.BlockSpec(w.shape, lambda i: (0, 0)))
    out_specs = pl.BlockSpec((tm, out_features), lambda i: (i, 0))

    flops = 2 * n * (packed["m1"].shape[0] * packed["m1"].shape[1]
                     + packed["m2"].shape[0] * packed["m2"].shape[1]
                     + packed["w3"].shape[0] * packed["w3"].shape[1]
                     + packed["w4"].shape[0] * packed["w4"].shape[1])
    bytes_accessed = (sum(int(a.size) * a.dtype.itemsize for a in args)
                      + n * out_features * jnp.dtype(out_dtype).itemsize)
    # Explicit scoped-VMEM budget: generous multiple of the (double-buffered)
    # packed operands, capped well below v7x's 64 MiB physical VMEM.
    vmem_limit = int(min(32 * 2**20, max(4 * 2**20, 8 * bytes_accessed)))

    return pl.pallas_call(
        _encoder_kernel,
        out_shape=jax.ShapeDtypeStruct((n, out_features), out_dtype),
        grid=grid,
        in_specs=in_specs,
        out_specs=out_specs,
        compiler_params=pltpu.CompilerParams(
            dimension_semantics=("parallel",),
            vmem_limit_bytes=vmem_limit),
        cost_estimate=pl.CostEstimate(flops=flops, transcendentals=0,
                                      bytes_accessed=bytes_accessed),
    )(*args)


# ----------------------------------------------------------------------------
# Init-time weight preparation (done ONCE, not per forward).
# ----------------------------------------------------------------------------
def _conv1d_as_matrix(w, b, l_in, *, stride, padding):
    """Lower Conv1d(weight=w, bias=b) acting on length-l_in NCL inputs to a dense
    (C_in*L_in, C_out*L_out) matrix and a (1, C_out*L_out) bias row such that
      y.view(N, -1) == x.view(N, -1) @ M + b_row
    with y in NCL layout (column order c_out*L_out + l)."""
    c_out, c_in, k = w.shape
    l_out = (l_in + 2 * padding - k) // stride + 1
    j = jnp.arange(l_in)[:, None, None]          # input position
    l = jnp.arange(l_out)[None, :, None]         # output position
    t = jnp.arange(k)[None, None, :]             # tap
    ind = (j == l * stride + t - padding).astype(w.dtype)   # (L_in, L_out, K)
    m = jnp.einsum("ock,jlk->cjol", w, ind)                  # (Cin, Lin, Cout, Lout)
    m = m.reshape(c_in * l_in, c_out * l_out)
    b_row = jnp.repeat(b, l_out)[None, :]                    # (1, Cout*Lout)
    return m, b_row


def pack_params(params, l_in):
    """Pre-lower conv weights to Toeplitz matrices, pre-transpose fc weights,
    and cast matmul operands to bf16 (biases stay f32 for the f32 epilogues)."""
    m1, b1 = _conv1d_as_matrix(params["conv1_w"], params["conv1_b"], l_in,
                               stride=1, padding=1)
    l1 = (l_in + 2 * 1 - 3) // 1 + 1
    m2, b2 = _conv1d_as_matrix(params["conv2_w"], params["conv2_b"], l1,
                               stride=2, padding=1)
    return {
        "m1": m1.astype(jnp.bfloat16), "b1": b1.astype(jnp.float32),
        "m2": m2.astype(jnp.bfloat16), "b2": b2.astype(jnp.float32),
        "w3": params["fc1_w"].T.astype(jnp.bfloat16),
        "b3": params["fc1_b"][None, :].astype(jnp.float32),
        "w4": params["fc2_w"].T.astype(jnp.bfloat16),
        "b4": params["fc2_b"][None, :].astype(jnp.float32),
    }


def init_params(key):
    ks = jax.random.split(key, 8)

    def w(k, shape, fan_in):
        return (jax.random.normal(k, shape, jnp.float32) / jnp.sqrt(fan_in)).astype(jnp.float32)

    return {
        "conv1_w": w(ks[0], (8, 4, 3), 4 * 3),
        "conv1_b": w(ks[1], (8,), 4 * 3),
        "conv2_w": w(ks[2], (16, 8, 3), 8 * 3),
        "conv2_b": w(ks[3], (16,), 8 * 3),
        "fc1_w":   w(ks[4], (32, 16 * 8), 16 * 8),
        "fc1_b":   w(ks[5], (32,), 16 * 8),
        "fc2_w":   w(ks[6], (16, 32), 32),
        "fc2_b":   w(ks[7], (16,), 32),
    }


# ----------------------------------------------------------------------------
# Pure-JAX f32 reference (matches the PyTorch module) for a correctness check.
# ----------------------------------------------------------------------------
def _reference_forward(x, params):
    def conv(h, w, b, stride, padding):
        y = jax.lax.conv_general_dilated(
            h, w, window_strides=(stride,), padding=[(padding, padding)],
            dimension_numbers=("NCH", "OIH", "NCH"))
        return y + b[None, :, None]

    h = jax.nn.relu(conv(x, params["conv1_w"], params["conv1_b"], 1, 1))
    h = jax.nn.relu(conv(h, params["conv2_w"], params["conv2_b"], 2, 1))
    h = h.reshape(x.shape[0], -1)
    h = jax.nn.relu(h @ params["fc1_w"].T + params["fc1_b"])
    return h @ params["fc2_w"].T + params["fc2_b"]


if __name__ == "__main__":
    key = jax.random.PRNGKey(0)
    k_in, k_params = jax.random.split(key)

    # Input: batch=2, channels=4, length=16 (NCL, matching torch Conv1d input).
    x = jax.random.normal(k_in, (2, 4, 16), jnp.float32)
    params = init_params(k_params)
    packed = pack_params(params, l_in=x.shape[2])     # one-time weight prep

    fwd = jax.jit(simple_encoder_forward)
    out = jax.block_until_ready(fwd(x, packed))

    assert out.shape == (2, 16), out.shape
    assert jnp.isfinite(out).all()

    # Tolerance accounts for bf16 MXU operands (f32 accumulation/epilogues).
    ref = _reference_forward(x, params)
    max_err = float(jnp.max(jnp.abs(out - ref)))
    assert jnp.allclose(out, ref, rtol=2e-2, atol=2e-2), max_err

    print("KERNEL_OK")
</pallas_src>

<mosaic_0001>
module attributes {stable_mosaic.version = 11 : i64} {
  func.func @_encoder_kernel(%arg0: i32, %arg1: memref<2x64xbf16, #tpu.memory_space<vmem>>, %arg2: memref<64x128xbf16, #tpu.memory_space<vmem>>, %arg3: memref<1x128xf32, #tpu.memory_space<vmem>>, %arg4: memref<128x128xbf16, #tpu.memory_space<vmem>>, %arg5: memref<1x128xf32, #tpu.memory_space<vmem>>, %arg6: memref<128x32xbf16, #tpu.memory_space<vmem>>, %arg7: memref<1x32xf32, #tpu.memory_space<vmem>>, %arg8: memref<32x16xbf16, #tpu.memory_space<vmem>>, %arg9: memref<1x16xf32, #tpu.memory_space<vmem>>, %arg10: memref<2x16xf32, #tpu.memory_space<vmem>>) attributes {dimension_semantics = [#tpu.dimension_semantics<parallel>], iteration_bounds = array<i64: 1>, scalar_prefetch = 0 : i64, scratch_operands = 0 : i64, tpu.core_type = #tpu.core_type<tc>, window_params = [{transform_indices = @transform_0, window_bounds = array<i64: 2, 64>}, {pipeline_mode = #tpu.pipeline_mode<synchronous>, transform_indices = @transform_1, window_bounds = array<i64: 64, 128>}, {pipeline_mode = #tpu.pipeline_mode<synchronous>, transform_indices = @transform_2, window_bounds = array<i64: 1, 128>}, {pipeline_mode = #tpu.pipeline_mode<synchronous>, transform_indices = @transform_3, window_bounds = array<i64: 128, 128>}, {pipeline_mode = #tpu.pipeline_mode<synchronous>, transform_indices = @transform_4, window_bounds = array<i64: 1, 128>}, {pipeline_mode = #tpu.pipeline_mode<synchronous>, transform_indices = @transform_5, window_bounds = array<i64: 128, 32>}, {pipeline_mode = #tpu.pipeline_mode<synchronous>, transform_indices = @transform_6, window_bounds = array<i64: 1, 32>}, {pipeline_mode = #tpu.pipeline_mode<synchronous>, transform_indices = @transform_7, window_bounds = array<i64: 32, 16>}, {pipeline_mode = #tpu.pipeline_mode<synchronous>, transform_indices = @transform_8, window_bounds = array<i64: 1, 16>}, {transform_indices = @transform_9, window_bounds = array<i64: 2, 16>}]} {
    %c0 = arith.constant 0 : index
    %c0_0 = arith.constant 0 : index
    %0 = vector.load %arg1[%c0, %c0_0] : memref<2x64xbf16, #tpu.memory_space<vmem>>, vector<2x64xbf16>
    %c0_1 = arith.constant 0 : index
    %c0_2 = arith.constant 0 : index
    %1 = vector.load %arg2[%c0_1, %c0_2] : memref<64x128xbf16, #tpu.memory_space<vmem>>, vector<64x128xbf16>
    %cst = arith.constant dense<0.000000e+00> : vector<2x128xf32>
    %2 = tpu.matmul %0, %1, %cst {dimension_numbers = #tpu.dot_dimension_numbers<[1], [0], [0], [1], [0, 0, 1, 1], [], []>} : vector<2x64xbf16>, vector<64x128xbf16>, vector<2x128xf32> -> vector<2x128xf32>
    %c0_3 = arith.constant 0 : index
    %c0_4 = arith.constant 0 : index
    %3 = vector.load %arg3[%c0_3, %c0_4] : memref<1x128xf32, #tpu.memory_space<vmem>>, vector<1x128xf32>
    %4 = vector.broadcast %3 : vector<1x128xf32> to vector<2x128xf32>
    %5 = arith.addf %2, %4 : vector<2x128xf32>
    %cst_5 = arith.constant 0.000000e+00 : f32
    %6 = vector.broadcast %cst_5 : f32 to vector<2x128xf32>
    %7 = arith.maximumf %5, %6 : vector<2x128xf32>
    %8 = arith.truncf %7 : vector<2x128xf32> to vector<2x128xbf16>
    %c0_6 = arith.constant 0 : index
    %c0_7 = arith.constant 0 : index
    %9 = vector.load %arg4[%c0_6, %c0_7] : memref<128x128xbf16, #tpu.memory_space<vmem>>, vector<128x128xbf16>
    %cst_8 = arith.constant dense<0.000000e+00> : vector<2x128xf32>
    %10 = tpu.matmul %8, %9, %cst_8 {dimension_numbers = #tpu.dot_dimension_numbers<[1], [0], [0], [1], [0, 0, 1, 1], [], []>} : vector<2x128xbf16>, vector<128x128xbf16>, vector<2x128xf32> -> vector<2x128xf32>
    %c0_9 = arith.constant 0 : index
    %c0_10 = arith.constant 0 : index
    %11 = vector.load %arg5[%c0_9, %c0_10] : memref<1x128xf32, #tpu.memory_space<vmem>>, vector<1x128xf32>
    %12 = vector.broadcast %11 : vector<1x128xf32> to vector<2x128xf32>
    %13 = arith.addf %10, %12 : vector<2x128xf32>
    %cst_11 = arith.constant 0.000000e+00 : f32
    %14 = vector.broadcast %cst_11 : f32 to vector<2x128xf32>
    %15 = arith.maximumf %13, %14 : vector<2x128xf32>
    %16 = arith.truncf %15 : vector<2x128xf32> to vector<2x128xbf16>
    %c0_12 = arith.constant 0 : index
    %c0_13 = arith.constant 0 : index
    %17 = vector.load %arg6[%c0_12, %c0_13] : memref<128x32xbf16, #tpu.memory_space<vmem>>, vector<128x32xbf16>
    %cst_14 = arith.constant dense<0.000000e+00> : vector<2x32xf32>
    %18 = tpu.matmul %16, %17, %cst_14 {dimension_numbers = #tpu.dot_dimension_numbers<[1], [0], [0], [1], [0, 0, 1, 1], [], []>} : vector<2x128xbf16>, vector<128x32xbf16>, vector<2x32xf32> -> vector<2x32xf32>
    %c0_15 = arith.constant 0 : index
    %c0_16 = arith.constant 0 : index
    %19 = vector.load %arg7[%c0_15, %c0_16] : memref<1x32xf32, #tpu.memory_space<vmem>>, vector<1x32xf32>
    %20 = vector.broadcast %19 : vector<1x32xf32> to vector<2x32xf32>
    %21 = arith.addf %18, %20 : vector<2x32xf32>
    %cst_17 = arith.constant 0.000000e+00 : f32
    %22 = vector.broadcast %cst_17 : f32 to vector<2x32xf32>
    %23 = arith.maximumf %21, %22 : vector<2x32xf32>
    %24 = arith.truncf %23 : vector<2x32xf32> to vector<2x32xbf16>
    %c0_18 = arith.constant 0 : index
    %c0_19 = arith.constant 0 : index
    %25 = vector.load %arg8[%c0_18, %c0_19] : memref<32x16xbf16, #tpu.memory_space<vmem>>, vector<32x16xbf16>
    %cst_20 = arith.constant dense<0.000000e+00> : vector<2x16xf32>
    %26 = tpu.matmul %24, %25, %cst_20 {dimension_numbers = #tpu.dot_dimension_numbers<[1], [0], [0], [1], [0, 0, 1, 1], [], []>} : vector<2x32xbf16>, vector<32x16xbf16>, vector<2x16xf32> -> vector<2x16xf32>
    %c0_21 = arith.constant 0 : index
    %c0_22 = arith.constant 0 : index
    %27 = vector.load %arg9[%c0_21, %c0_22] : memref<1x16xf32, #tpu.memory_space<vmem>>, vector<1x16xf32>
    %28 = vector.broadcast %27 : vector<1x16xf32> to vector<2x16xf32>
    %29 = arith.addf %26, %28 : vector<2x16xf32>
    %c0_23 = arith.constant 0 : index
    %c0_24 = arith.constant 0 : index
    %30 = vector.load %arg10[%c0_23, %c0_24] : memref<2x16xf32, #tpu.memory_space<vmem>>, vector<2x16xf32>
    tpu.vector_store %arg10[%c0_23, %c0_24], %29 {strides = array<i32>} : memref<2x16xf32, #tpu.memory_space<vmem>>, vector<2x16xf32>,
    return
  }
  func.func @transform_0(%arg0: i32) -> (i32, i32) {
    %c0_i32 = arith.constant 0 : i32
    %c0_i32_0 = arith.constant 0 : i32
    return %arg0, %c0_i32 : i32, i32
  }
  func.func @transform_1(%arg0: i32) -> (i32, i32) {
    %c0_i32 = arith.constant 0 : i32
    %c0_i32_0 = arith.constant 0 : i32
    %c0_i32_1 = arith.constant 0 : i32
    return %c0_i32, %c0_i32_0 : i32, i32
  }
  func.func @transform_2(%arg0: i32) -> (i32, i32) {
    %c0_i32 = arith.constant 0 : i32
    %c0_i32_0 = arith.constant 0 : i32
    %c0_i32_1 = arith.constant 0 : i32
    return %c0_i32, %c0_i32_0 : i32, i32
  }
  func.func @transform_3(%arg0: i32) -> (i32, i32) {
    %c0_i32 = arith.constant 0 : i32
    %c0_i32_0 = arith.constant 0 : i32
    %c0_i32_1 = arith.constant 0 : i32
    return %c0_i32, %c0_i32_0 : i32, i32
  }
  func.func @transform_4(%arg0: i32) -> (i32, i32) {
    %c0_i32 = arith.constant 0 : i32
    %c0_i32_0 = arith.constant 0 : i32
    %c0_i32_1 = arith.constant 0 : i32
    return %c0_i32, %c0_i32_0 : i32, i32
  }
  func.func @transform_5(%arg0: i32) -> (i32, i32) {
    %c0_i32 = arith.constant 0 : i32
    %c0_i32_0 = arith.constant 0 : i32
    %c0_i32_1 = arith.constant 0 : i32
    return %c0_i32, %c0_i32_0 : i32, i32
  }
  func.func @transform_6(%arg0: i32) -> (i32, i32) {
    %c0_i32 = arith.constant 0 : i32
    %c0_i32_0 = arith.constant 0 : i32
    %c0_i32_1 = arith.constant 0 : i32
    return %c0_i32, %c0_i32_0 : i32, i32
  }
  func.func @transform_7(%arg0: i32) -> (i32, i32) {
    %c0_i32 = arith.constant 0 : i32
    %c0_i32_0 = arith.constant 0 : i32
    %c0_i32_1 = arith.constant 0 : i32
    return %c0_i32, %c0_i32_0 : i32, i32
  }
  func.func @transform_8(%arg0: i32) -> (i32, i32) {
    %c0_i32 = arith.constant 0 : i32
    %c0_i32_0 = arith.constant 0 : i32
    %c0_i32_1 = arith.constant 0 : i32
    return %c0_i32, %c0_i32_0 : i32, i32
  }
  func.func @transform_9(%arg0: i32) -> (i32, i32) {
    %c0_i32 = arith.constant 0 : i32
    %c0_i32_0 = arith.constant 0 : i32
    return %arg0, %c0_i32 : i32, i32
  }
}

</mosaic_0001>

<llo_original>
// kernel: simple_encoder_forward.1
$region0: #{simple_encoder_forward.1}
  #allocation0 [shape = 'u32[]', space=smem, size = 0x4, offset = 0x4, fixed_abs, tag = 'smem constant byte address 0x4 - core index']
  #allocation1 [shape = 'u32[144,128]{1,0:T(1,128)}', space=vmem, size = 0x12000, scoped, tag = 'internal scratch']
  %s0 = inlined_call_operand.vmem [shape: bf16[2,64], index: 0, kind: input, shape index: {}]
  %s1 = inlined_call_operand.vmem [shape: bf16[64,128], index: 1, kind: input, shape index: {}]
  %s2 = inlined_call_operand.vmem [shape: f32[1,128], index: 2, kind: input, shape index: {}]
  %s3 = inlined_call_operand.vmem [shape: bf16[128,128], index: 3, kind: input, shape index: {}]
  %s4 = inlined_call_operand.vmem [shape: f32[1,128], index: 4, kind: input, shape index: {}]
  %s5 = inlined_call_operand.vmem [shape: bf16[128,32], index: 5, kind: input, shape index: {}]
  %s6 = inlined_call_operand.vmem [shape: f32[1,32], index: 6, kind: input, shape index: {}]
  %s7 = inlined_call_operand.vmem [shape: bf16[32,16], index: 7, kind: input, shape index: {}]
  %s8 = inlined_call_operand.vmem [shape: f32[1,16], index: 8, kind: input, shape index: {}]
  %s9 = inlined_call_operand.hbm [shape: f32[2,16], index: 9, kind: output, shape index: {}]
  %s10 = sld [smem:[#allocation0]]
  $region46: #{simple_encoder_forward.1} parent=0
    _
  %s12 = ssub.s32 1, %s10
  %s13 = scalar_select 0, %s12, %s10
  $region1: #{simple_encoder_forward.1} parent=0
    #allocation2 [shape = 'u8[1024]{0}', space=vmem, size = 0x400, scoped, tag = 'output window, operand 0, single buffered']
    #allocation3 [shape = 's32[1]{0}', space=sflag, size = 0x4, scoped, tag = 'scoped memory for simple_encoder_forward.1']
    %14 = vsyncpa [#allocation3], 0
    // Predicated region
    $region2: #{simple_encoder_forward.1} parent=1 // pred_check
      _
    $region3: #{simple_encoder_forward.1} parent=1 // pred_check_branch
      %16 = sbr.rel (0) target = $region5
    $region4: #{simple_encoder_forward.1} parent=1 // pred_region
      _
    $region5: #{simple_encoder_forward.1} parent=1 // pred_fallthru
      _
    // Predicated region
    $region6: #{simple_encoder_forward.1} parent=1 // pred_check
      _
    $region7: #{simple_encoder_forward.1} parent=1 // pred_check_branch
      %18 = sbr.rel (0) target = $region9
    $region8: #{simple_encoder_forward.1} parent=1 // pred_region
      _
    $region9: #{simple_encoder_forward.1} parent=1 // pred_fallthru
      _
    // Predicated region
    $region10: #{simple_encoder_forward.1} parent=1 // pred_check
      _
    $region11: #{simple_encoder_forward.1} parent=1 // pred_check_branch
      %20 = sbr.rel (0) target = $region13
    $region12: #{simple_encoder_forward.1} parent=1 // pred_region
      _
    $region13: #{simple_encoder_forward.1} parent=1 // pred_fallthru
      _
    // Predicated region
    $region14: #{simple_encoder_forward.1} parent=1 // pred_check
      _
    $region15: #{simple_encoder_forward.1} parent=1 // pred_check_branch
      %22 = sbr.rel (0) target = $region17
    $region16: #{simple_encoder_forward.1} parent=1 // pred_region
      _
    $region17: #{simple_encoder_forward.1} parent=1 // pred_fallthru
      _
    // Predicated region
    $region18: #{simple_encoder_forward.1} parent=1 // pred_check
      _
    $region19: #{simple_encoder_forward.1} parent=1 // pred_check_branch
      %24 = sbr.rel (0) target = $region21
    $region20: #{simple_encoder_forward.1} parent=1 // pred_region
      _
    $region21: #{simple_encoder_forward.1} parent=1 // pred_fallthru
      _
    // Predicated region
    $region22: #{simple_encoder_forward.1} parent=1 // pred_check
      _
    $region23: #{simple_encoder_forward.1} parent=1 // pred_check_branch
      %26 = sbr.rel (0) target = $region25
    $region24: #{simple_encoder_forward.1} parent=1 // pred_region
      _
    $region25: #{simple_encoder_forward.1} parent=1 // pred_fallthru
      _
    // Predicated region
    $region26: #{simple_encoder_forward.1} parent=1 // pred_check
      _
    $region27: #{simple_encoder_forward.1} parent=1 // pred_check_branch
      %28 = sbr.rel (0) target = $region29
    $region28: #{simple_encoder_forward.1} parent=1 // pred_region
      _
    $region29: #{simple_encoder_forward.1} parent=1 // pred_fallthru
      _
    // Predicated region
    $region30: #{simple_encoder_forward.1} parent=1 // pred_check
      _
    $region31: #{simple_encoder_forward.1} parent=1 // pred_check_branch
      %30 = sbr.rel (0) target = $region33
    $region32: #{simple_encoder_forward.1} parent=1 // pred_region
      _
    $region33: #{simple_encoder_forward.1} parent=1 // pred_fallthru
      _
    // Predicated region
    $region34: #{simple_encoder_forward.1} parent=1 // pred_check
      _
    $region35: #{simple_encoder_forward.1} parent=1 // pred_check_branch
      %32 = sbr.rel (0) target = $region37
    $region36: #{simple_encoder_forward.1} parent=1 // pred_region
      _
    $region37: #{simple_encoder_forward.1} parent=1 // pred_fallthru
      _
    %v34 = vld [vmem:[%s0] sm:$0x1]
    %v35 = vld [vmem:[%s1] sm:$0xf]
    %v36 = vld [vmem:[%s1 + $0x4] sm:$0xf]
    %v37 = vld [vmem:[%s1 + $0x8] sm:$0xf]
    %v38 = vld [vmem:[%s1 + $0xc] sm:$0xf]
    %v39 = vld [vmem:[%s1 + $0x10] sm:$0xf]
    %v40 = vld [vmem:[%s1 + $0x14] sm:$0xf]
    %v41 = vld [vmem:[%s1 + $0x18] sm:$0xf]
    %v42 = vld [vmem:[%s1 + $0x1c] sm:$0xf]
    %v43 = vld [vmem:[%s2] sm:$0x1]
    %v45 = vlaneseq
    %v46 = vshrl.u32 %v45, 7
    %v47 = vsub.s32 0, %v46
    %v48 = vrot.slane %v43, %v47
    %v58 = vunpack.c.l.b16 %v35
    %v59 = vunpack.c.l.b16 %v36
    %v60 = vunpack.c.l.b16 %v37
    %v61 = vunpack.c.l.b16 %v38
    %v62 = vunpack.c.l.b16 %v39
    %v63 = vunpack.c.l.b16 %v40
    %v64 = vunpack.c.l.b16 %v41
    %v65 = vunpack.c.l.b16 %v42
    %v66 = vpack.c.b16 %v59, %v58
    %v67 = vpack.c.b16 %v61, %v60
    %v68 = vpack.c.b16 %v63, %v62
    %v69 = vpack.c.b16 %v65, %v64
    %vm74 = vcmask 523264
    %v76 = vsel %vm74, %v34, 0
    %78 = vmatprep.subr.bf16.mxu0 0
    %79 = vmatpush1.bf16.msra.mxu0 0
    %80 = vmatprep.subr.bf16.mxu0 0
    %81 = vmatpush1.bf16.msra.mxu0 0
    %82 = vmatprep.subr.bf16.mxu0 0
    %83 = vmatpush1.bf16.msra.mxu0 0
    %84 = vmatprep.subr.bf16.mxu0 0
    %85 = vmatpush1.bf16.msra.mxu0 0
    %86 = vmatprep.subr.bf16.mxu0 0
    %87 = vmatpush1.bf16.msra.mxu0 %v69
    %88 = vmatprep.subr.bf16.mxu0 0
    %89 = vmatpush1.bf16.msra.mxu0 %v68
    %90 = vmatprep.subr.bf16.mxu0 0
    %91 = vmatpush1.bf16.msra.mxu0 %v67
    %92 = vmatprep.subr.bf16.mxu0 0
    %93 = vmatpush1.bf16.msra.mxu0 %v66
    %94 = vmatprep.subr.bf16.mxu0 0
    %95 = vmatpush2.bf16.msra.mxu0 0
    %96 = vmatprep.subr.bf16.mxu0 0
    %97 = vmatpush2.bf16.msra.mxu0 0
    %98 = vmatprep.subr.bf16.mxu0 0
    %99 = vmatpush2.bf16.msra.mxu0 0
    %100 = vmatprep.subr.bf16.mxu0 0
    %101 = vmatpush2.bf16.msra.mxu0 0
    %102 = vmatprep.subr.bf16.mxu0 0
    %103 = vmatpush2.bf16.msra.mxu0 0
    %104 = vmatprep.subr.bf16.mxu0 0
    %105 = vmatpush2.bf16.msra.mxu0 0
    %106 = vmatprep.subr.bf16.mxu0 0
    %107 = vmatpush2.bf16.msra.mxu0 0
    %108 = vmatprep.subr.bf16.mxu0 0
    %109 = vmatpush2.bf16.msra.mxu0 0
    %110 = vmatprep.mubr.bf16.mxu0 0
    %111 = vmatmul.mubr.bf16.gmra.mxu0 %v76
    %v112 = vpop.f32.mrf.mxu0
    %v113 = vadd.f32 %v48, %v112
    %v114 = vpop.f32.mrf.mxu0
    %v115 = vpop.f32.mrf.mxu0
    %v116 = vpop.f32.mrf.mxu0
    %117 = vdwg.mxu0
    %v118 = vmax.f32 %v113, 0.0
    %v119 = vpack.c.bf16 %v118, %v118
    %v120 = vld [vmem:[%s3] sm:$0xf]
    %v121 = vld [vmem:[%s3 + $0x4] sm:$0xf]
    %v122 = vld [vmem:[%s3 + $0x8] sm:$0xf]
    %v123 = vld [vmem:[%s3 + $0xc] sm:$0xf]
    %v124 = vld [vmem:[%s3 + $0x10] sm:$0xf]
    %v125 = vld [vmem:[%s3 + $0x14] sm:$0xf]
    %v126 = vld [vmem:[%s3 + $0x18] sm:$0xf]
    %v127 = vld [vmem:[%s3 + $0x1c] sm:$0xf]
    %v128 = vld [vmem:[%s3 + $0x20] sm:$0xf]
    %v129 = vld [vmem:[%s3 + $0x24] sm:$0xf]
    %v130 = vld [vmem:[%s3 + $0x28] sm:$0xf]
    %v131 = vld [vmem:[%s3 + $0x2c] sm:$0xf]
    %v132 = vld [vmem:[%s3 + $0x30] sm:$0xf]
    %v133 = vld [vmem:[%s3 + $0x34] sm:$0xf]
    %v134 = vld [vmem:[%s3 + $0x38] sm:$0xf]
    %v135 = vld [vmem:[%s3 + $0x3c] sm:$0xf]
    %v136 = vld [vmem:[%s4] sm:$0x1]
    %v138 = vlaneseq
    %v139 = vshrl.u32 %v138, 7
    %v140 = vsub.s32 0, %v139
    %v141 = vrot.slane %v136, %v140
    %v159 = vunpack.c.l.b16 %v120
    %v160 = vunpack.c.l.b16 %v121
    %v161 = vunpack.c.l.b16 %v122
    %v162 = vunpack.c.l.b16 %v123
    %v163 = vunpack.c.l.b16 %v124
    %v164 = vunpack.c.l.b16 %v125
    %v165 = vunpack.c.l.b16 %v126
    %v166 = vunpack.c.l.b16 %v127
    %v167 = vunpack.c.l.b16 %v128
    %v168 = vunpack.c.l.b16 %v129
    %v169 = vunpack.c.l.b16 %v130
    %v170 = vunpack.c.l.b16 %v131
    %v171 = vunpack.c.l.b16 %v132
    %v172 = vunpack.c.l.b16 %v133
    %v173 = vunpack.c.l.b16 %v134
    %v174 = vunpack.c.l.b16 %v135
    %v175 = vpack.c.b16 %v160, %v159
    %v176 = vpack.c.b16 %v162, %v161
    %v177 = vpack.c.b16 %v164, %v163
    %v178 = vpack.c.b16 %v166, %v165
    %v179 = vpack.c.b16 %v168, %v167
    %v180 = vpack.c.b16 %v170, %v169
    %v181 = vpack.c.b16 %v172, %v171
    %v182 = vpack.c.b16 %v174, %v173
    %191 = vmatprep.subr.bf16.mxu0 0
    %192 = vmatpush1.bf16.msra.mxu0 %v182
    %193 = vmatprep.subr.bf16.mxu0 0
    %194 = vmatpush1.bf16.msra.mxu0 %v181
    %195 = vmatprep.subr.bf16.mxu0 0
    %196 = vmatpush1.bf16.msra.mxu0 %v180
    %197 = vmatprep.subr.bf16.mxu0 0
    %198 = vmatpush1.bf16.msra.mxu0 %v179
    %199 = vmatprep.subr.bf16.mxu0 0
    %200 = vmatpush1.bf16.msra.mxu0 %v178
    %201 = vmatprep.subr.bf16.mxu0 0
    %202 = vmatpush1.bf16.msra.mxu0 %v177
    %203 = vmatprep.subr.bf16.mxu0 0
    %204 = vmatpush1.bf16.msra.mxu0 %v176
    %205 = vmatprep.subr.bf16.mxu0 0
    %206 = vmatpush1.bf16.msra.mxu0 %v175
    %207 = vmatprep.subr.bf16.mxu0 0
    %208 = vmatpush2.bf16.msra.mxu0 0
    %209 = vmatprep.subr.bf16.mxu0 0
    %210 = vmatpush2.bf16.msra.mxu0 0
    %211 = vmatprep.subr.bf16.mxu0 0
    %212 = vmatpush2.bf16.msra.mxu0 0
    %213 = vmatprep.subr.bf16.mxu0 0
    %214 = vmatpush2.bf16.msra.mxu0 0
    %215 = vmatprep.subr.bf16.mxu0 0
    %216 = vmatpush2.bf16.msra.mxu0 0
    %217 = vmatprep.subr.bf16.mxu0 0
    %218 = vmatpush2.bf16.msra.mxu0 0
    %219 = vmatprep.subr.bf16.mxu0 0
    %220 = vmatpush2.bf16.msra.mxu0 0
    %221 = vmatprep.subr.bf16.mxu0 0
    %222 = vmatpush2.bf16.msra.mxu0 0
    %223 = vmatprep.mubr.bf16.mxu0 0
    %224 = vmatmul.mubr.bf16.gmra.mxu0 %v119
    %v225 = vpop.f32.mrf.mxu0
    %v226 = vadd.f32 %v141, %v225
    %v227 = vpop.f32.mrf.mxu0
    %v228 = vpop.f32.mrf.mxu0
    %v229 = vpop.f32.mrf.mxu0
    %230 = vdwg.mxu0
    %v231 = vmax.f32 %v226, 0.0
    %v232 = vpack.c.bf16 %v231, %v231
    %v233 = vld [vmem:[%s5] sm:$0xf]
    %v234 = vld [vmem:[%s5 + $0x4] sm:$0xf]
    %v235 = vld [vmem:[%s5 + $0x8] sm:$0xf]
    %v236 = vld [vmem:[%s5 + $0xc] sm:$0xf]
    %v237 = vld [vmem:[%s5 + $0x10] sm:$0xf]
    %v238 = vld [vmem:[%s5 + $0x14] sm:$0xf]
    %v239 = vld [vmem:[%s5 + $0x18] sm:$0xf]
    %v240 = vld [vmem:[%s5 + $0x1c] sm:$0xf]
    %v241 = vld [vmem:[%s5 + $0x20] sm:$0xf]
    %v242 = vld [vmem:[%s5 + $0x24] sm:$0xf]
    %v243 = vld [vmem:[%s5 + $0x28] sm:$0xf]
    %v244 = vld [vmem:[%s5 + $0x2c] sm:$0xf]
    %v245 = vld [vmem:[%s5 + $0x30] sm:$0xf]
    %v246 = vld [vmem:[%s5 + $0x34] sm:$0xf]
    %v247 = vld [vmem:[%s5 + $0x38] sm:$0xf]
    %v248 = vld [vmem:[%s5 + $0x3c] sm:$0xf]
    %v249 = vld [vmem:[%s6] sm:$0x1]
    %v251 = vlaneseq
    %v252 = vshrl.u32 %v251, 7
    %v253 = vsub.s32 0, %v252
    %v254 = vrot.slane %v249, %v253
    %v272 = vunpack.c.l.b16 %v233
    %v273 = vunpack.c.l.b16 %v234
    %v274 = vunpack.c.l.b16 %v235
    %v275 = vunpack.c.l.b16 %v236
    %v276 = vunpack.c.l.b16 %v237
    %v277 = vunpack.c.l.b16 %v238
    %v278 = vunpack.c.l.b16 %v239
    %v279 = vunpack.c.l.b16 %v240
    %v280 = vunpack.c.l.b16 %v241
    %v281 = vunpack.c.l.b16 %v242
    %v282 = vunpack.c.l.b16 %v243
    %v283 = vunpack.c.l.b16 %v244
    %v284 = vunpack.c.l.b16 %v245
    %v285 = vunpack.c.l.b16 %v246
    %v286 = vunpack.c.l.b16 %v247
    %v287 = vunpack.c.l.b16 %v248
    %v288 = vpack.c.b16 %v273, %v272
    %v289 = vpack.c.b16 %v275, %v274
    %v290 = vpack.c.b16 %v277, %v276
    %v291 = vpack.c.b16 %v279, %v278
    %v292 = vpack.c.b16 %v281, %v280
    %v293 = vpack.c.b16 %v283, %v282
    %v294 = vpack.c.b16 %v285, %v284
    %v295 = vpack.c.b16 %v287, %v286
    %304 = vmatprep.subr.bf16.mxu0 0
    %305 = vmatpush1.bf16.msra.mxu0 %v295
    %306 = vmatprep.subr.bf16.mxu0 0
    %307 = vmatpush1.bf16.msra.mxu0 %v294
    %308 = vmatprep.subr.bf16.mxu0 0
    %309 = vmatpush1.bf16.msra.mxu0 %v293
    %310 = vmatprep.subr.bf16.mxu0 0
    %311 = vmatpush1.bf16.msra.mxu0 %v292
    %312 = vmatprep.subr.bf16.mxu0 0
    %313 = vmatpush1.bf16.msra.mxu0 %v291
    %314 = vmatprep.subr.bf16.mxu0 0
    %315 = vmatpush1.bf16.msra.mxu0 %v290
    %316 = vmatprep.subr.bf16.mxu0 0
    %317 = vmatpush1.bf16.msra.mxu0 %v289
    %318 = vmatprep.subr.bf16.mxu0 0
    %319 = vmatpush1.bf16.msra.mxu0 %v288
    %320 = vmatprep.subr.bf16.mxu0 0
    %321 = vmatpush2.bf16.msra.mxu0 0
    %322 = vmatprep.subr.bf16.mxu0 0
    %323 = vmatpush2.bf16.msra.mxu0 0
    %324 = vmatprep.subr.bf16.mxu0 0
    %325 = vmatpush2.bf16.msra.mxu0 0
    %326 = vmatprep.subr.bf16.mxu0 0
    %327 = vmatpush2.bf16.msra.mxu0 0
    %328 = vmatprep.subr.bf16.mxu0 0
    %329 = vmatpush2.bf16.msra.mxu0 0
    %330 = vmatprep.subr.bf16.mxu0 0
    %331 = vmatpush2.bf16.msra.mxu0 0
    %332 = vmatprep.subr.bf16.mxu0 0
    %333 = vmatpush2.bf16.msra.mxu0 0
    %334 = vmatprep.subr.bf16.mxu0 0
    %335 = vmatpush2.bf16.msra.mxu0 0
    %336 = vmatprep.mubr.bf16.mxu0 0
    %337 = vmatmul.mubr.bf16.gmra.mxu0 %v232
    %v338 = vpop.f32.mrf.mxu0
    %v339 = vadd.f32 %v254, %v338
    %v340 = vpop.f32.mrf.mxu0
    %v341 = vpop.f32.mrf.mxu0
    %v342 = vpop.f32.mrf.mxu0
    %343 = vdwg.mxu0
    %v344 = vmax.f32 %v339, 0.0
    %v345 = vpack.c.bf16 %v344, %v344
    %v346 = vld [vmem:[%s7] sm:$0xf]
    %v347 = vld [vmem:[%s7 + $0x4] sm:$0xf]
    %v348 = vld [vmem:[%s7 + $0x8] sm:$0xf]
    %v349 = vld [vmem:[%s7 + $0xc] sm:$0xf]
    %v350 = vld [vmem:[%s8] sm:$0x1]
    %v352 = vlaneseq
    %v353 = vshrl.u32 %v352, 7
    %v354 = vsub.s32 0, %v353
    %v355 = vrot.slane %v350, %v354
    %v361 = vunpack.c.l.b16 %v346
    %v362 = vunpack.c.l.b16 %v347
    %v363 = vunpack.c.l.b16 %v348
    %v364 = vunpack.c.l.b16 %v349
    %v365 = vpack.c.b16 %v362, %v361
    %v366 = vpack.c.b16 %v364, %v363
    %vm369 = vcmask 261120
    %v371 = vsel %vm369, %v345, 0
    %373 = vmatprep.subr.bf16.mxu0 0
    %374 = vmatpush1.bf16.msra.mxu0 0
    %375 = vmatprep.subr.bf16.mxu0 0
    %376 = vmatpush1.bf16.msra.mxu0 0
    %377 = vmatprep.subr.bf16.mxu0 0
    %378 = vmatpush1.bf16.msra.mxu0 0
    %379 = vmatprep.subr.bf16.mxu0 0
    %380 = vmatpush1.bf16.msra.mxu0 0
    %381 = vmatprep.subr.bf16.mxu0 0
    %382 = vmatpush1.bf16.msra.mxu0 0
    %383 = vmatprep.subr.bf16.mxu0 0
    %384 = vmatpush1.bf16.msra.mxu0 0
    %385 = vmatprep.subr.bf16.mxu0 0
    %386 = vmatpush1.bf16.msra.mxu0 %v366
    %387 = vmatprep.subr.bf16.mxu0 0
    %388 = vmatpush1.bf16.msra.mxu0 %v365
    %389 = vmatprep.subr.bf16.mxu0 0
    %390 = vmatpush2.bf16.msra.mxu0 0
    %391 = vmatprep.subr.bf16.mxu0 0
    %392 = vmatpush2.bf16.msra.mxu0 0
    %393 = vmatprep.subr.bf16.mxu0 0
    %394 = vmatpush2.bf16.msra.mxu0 0
    %395 = vmatprep.subr.bf16.mxu0 0
    %396 = vmatpush2.bf16.msra.mxu0 0
    %397 = vmatprep.subr.bf16.mxu0 0
    %398 = vmatpush2.bf16.msra.mxu0 0
    %399 = vmatprep.subr.bf16.mxu0 0
    %400 = vmatpush2.bf16.msra.mxu0 0
    %401 = vmatprep.subr.bf16.mxu0 0
    %402 = vmatpush2.bf16.msra.mxu0 0
    %403 = vmatprep.subr.bf16.mxu0 0
    %404 = vmatpush2.bf16.msra.mxu0 0
    %405 = vmatprep.mubr.bf16.mxu0 0
    %406 = vmatmul.mubr.bf16.gmra.mxu0 %v371
    %v407 = vpop.f32.mrf.mxu0
    %v408 = vadd.f32 %v355, %v407
    %v409 = vpop.f32.mrf.mxu0
    %v410 = vpop.f32.mrf.mxu0
    %v411 = vpop.f32.mrf.mxu0
    %412 = vdwg.mxu0
    %vm413 = vcmask 123904
    %414 = vst.msk [vmem:[#allocation2] sm:$0x3] %vm413, %v408
    // Predicated region
    $region38: #{simple_encoder_forward.1} parent=1 // pred_check
      _
    $region39: #{simple_encoder_forward.1} parent=1 // pred_check_branch
      %416 = sbr.rel (0) target = $region41
    $region40: #{simple_encoder_forward.1} parent=1 // pred_region
      %s418 = ssub.s32 32, 32
      %419 = vsyncadd [#allocation3], %s418
      %s421 = sshll.u32 [#allocation2], 4
      %s422 = int_to_ptr.vmem [resolvable:$true] %s421
      %424 = dma.vmem_to_hbm [thread:$0]  %s422, 32, %s9, [#allocation3]
    $region41: #{simple_encoder_forward.1} parent=1 // pred_fallthru
      _
    // Predicated region
    $region42: #{simple_encoder_forward.1} parent=1 // pred_check
      _
    $region43: #{simple_encoder_forward.1} parent=1 // pred_check_branch
      %426 = sbr.rel (0) target = $region45
    $region44: #{simple_encoder_forward.1} parent=1 // pred_region
      %427 = dma.done [#allocation3], 32
    $region45: #{simple_encoder_forward.1} parent=1 // pred_fallthru
      _
    %428 = vsyncpa [#allocation3], 1

</llo_original>
